<compile_context>
chip_gen: v7x
topology: tpu7x:2x2x1
jax: 0.10.0
libtpu: 0.0.40
codegen_flags: <defaults>
</compile_context>

<pallas_src>
import jax
import jax.numpy as jnp
from jax.experimental import pallas as pl
from jax.experimental.pallas import tpu as pltpu


def _state_encoder_kernel(feat_ref, pos_ref, wt_ref, out_ref):
    """out = tanh(gamma * pos + beta), gamma|beta = features @ Wt + b, on the VPU.

    feat_ref : VMEM (B, feat_dim)            f32
    pos_ref  : VMEM (B, pos_dim)             f32
    wt_ref   : VMEM (feat_dim+1, 2*pos_dim)  f32   -- augmented [W.T ; b] slab
    out_ref  : VMEM (B, pos_dim)             f32
    """
    B, pos_dim = out_ref.shape
    feat_dim = wt_ref.shape[0] - 1

    feat = feat_ref[...]                               # (B, feat_dim)

    # Start from the bias row (last row of the augmented slab); the first FMA's
    # broadcast promotes it to (B, 2*pos_dim).
    gb = wt_ref[feat_dim : feat_dim + 1, :]            # (1, 2*pos_dim)
    for k in range(feat_dim):                          # static & tiny (3)
        # (B,1) feature column * (1, 2*pos_dim) weight row -> one batched VPU FMA.
        gb = gb + feat[:, k : k + 1] * wt_ref[k : k + 1, :]

    # Static lane split at pos_dim (multiple of 128): aligned, no relayout.
    gamma = gb[:, :pos_dim]
    beta = gb[:, pos_dim:]
    # Single batched tanh (EUP) + single lane-dense store.
    out_ref[...] = jnp.tanh(gamma * pos_ref[...] + beta)


def prepare_params(w, b):
    """One-time preprocessing of nn.Linear params into the kernel layout.

    w: (2*pos_dim, feat_dim), b: (2*pos_dim,)
    -> wt_aug: (feat_dim+1, 2*pos_dim)  == [W.T ; b]   (lane-dense slab)
    """
    return jnp.concatenate([w.T, b[None, :]], axis=0)


@jax.jit
def state_encoder(pos_emb, features, wt_aug):
    """
    pos_emb : (B, pos_dim) f32
    features: (B, feat_dim) f32
    wt_aug  : (feat_dim+1, 2*pos_dim) f32   -- from prepare_params
    returns : (B, pos_dim) f32
    """
    B, pos_dim = pos_emb.shape
    feat_dim = features.shape[-1]
    two_pos = 2 * pos_dim
    assert wt_aug.shape == (feat_dim + 1, two_pos)
    # Aligned gamma/beta lane split and lane-dense stores rely on this.
    assert pos_dim % 128 == 0, "pos_dim must be a multiple of 128"

    full = lambda shape: pl.BlockSpec(shape, lambda: (0,) * len(shape))
    return pl.pallas_call(
        _state_encoder_kernel,
        out_shape=jax.ShapeDtypeStruct((B, pos_dim), pos_emb.dtype),
        grid=(),
        in_specs=[
            full((B, feat_dim)),          # features
            full((B, pos_dim)),           # pos_emb
            full((feat_dim + 1, two_pos)),  # augmented [W.T ; b] slab
        ],
        out_specs=full((B, pos_dim)),
    )(features, pos_emb, wt_aug)


def _reference(pos_emb, features, w, b):
    gamma_beta = features @ w.T + b
    pos_dim = pos_emb.shape[-1]
    gamma, beta = gamma_beta[:, :pos_dim], gamma_beta[:, pos_dim:]
    return jnp.tanh(gamma * pos_emb + beta)


if __name__ == "__main__":
    B, pos_dim, feat_dim = 2, 256, 3

    key = jax.random.PRNGKey(0)
    k_pos, k_feat, k_w, k_b = jax.random.split(key, 4)

    pos_emb = jax.random.normal(k_pos, (B, pos_dim), dtype=jnp.float32)
    features = jax.random.normal(k_feat, (B, feat_dim), dtype=jnp.float32)

    # Deterministic nn.Linear-style init: U(-1/sqrt(feat_dim), 1/sqrt(feat_dim)).
    bound = 1.0 / (feat_dim ** 0.5)
    w = jax.random.uniform(k_w, (2 * pos_dim, feat_dim), jnp.float32, -bound, bound)
    b = jax.random.uniform(k_b, (2 * pos_dim,), jnp.float32, -bound, bound)

    # One-time parameter preprocessing (hoisted out of the per-call path).
    wt_aug = jax.block_until_ready(prepare_params(w, b))

    out = state_encoder(pos_emb, features, wt_aug)
    out = jax.block_until_ready(out)

    ref = _reference(pos_emb, features, w, b)
    assert out.shape == (B, pos_dim)
    assert jnp.allclose(out, ref, atol=1e-5, rtol=1e-5), "mismatch vs reference"

    print("KERNEL_OK")
</pallas_src>

<mosaic_0001>
module attributes {stable_mosaic.version = 11 : i64} {
  func.func @_state_encoder_kernel(%arg0: memref<2x3xf32, #tpu.memory_space<vmem>>, %arg1: memref<2x256xf32, #tpu.memory_space<vmem>>, %arg2: memref<4x512xf32, #tpu.memory_space<vmem>>, %arg3: memref<2x256xf32, #tpu.memory_space<vmem>>) attributes {dimension_semantics = [], scalar_prefetch = 0 : i64, scratch_operands = 0 : i64, tpu.core_type = #tpu.core_type<tc>} {
    %c0 = arith.constant 0 : index
    %c0_0 = arith.constant 0 : index
    %0 = vector.load %arg0[%c0, %c0_0] : memref<2x3xf32, #tpu.memory_space<vmem>>, vector<2x3xf32>
    %c3 = arith.constant 3 : index
    %c0_1 = arith.constant 0 : index
    %1 = vector.load %arg2[%c3, %c0_1] : memref<4x512xf32, #tpu.memory_space<vmem>>, vector<1x512xf32>
    %2 = vector.extract_strided_slice %0 {offsets = [0, 0], sizes = [2, 1], strides = [1, 1]} : vector<2x3xf32> to vector<2x1xf32>
    %c0_2 = arith.constant 0 : index
    %c0_3 = arith.constant 0 : index
    %3 = vector.load %arg2[%c0_2, %c0_3] : memref<4x512xf32, #tpu.memory_space<vmem>>, vector<1x512xf32>
    %4 = vector.broadcast %2 : vector<2x1xf32> to vector<2x512xf32>
    %5 = vector.broadcast %3 : vector<1x512xf32> to vector<2x512xf32>
    %6 = arith.mulf %4, %5 : vector<2x512xf32>
    %7 = vector.broadcast %1 : vector<1x512xf32> to vector<2x512xf32>
    %8 = arith.addf %7, %6 : vector<2x512xf32>
    %9 = vector.extract_strided_slice %0 {offsets = [0, 1], sizes = [2, 1], strides = [1, 1]} : vector<2x3xf32> to vector<2x1xf32>
    %c1 = arith.constant 1 : index
    %c0_4 = arith.constant 0 : index
    %10 = vector.load %arg2[%c1, %c0_4] : memref<4x512xf32, #tpu.memory_space<vmem>>, vector<1x512xf32>
    %11 = vector.broadcast %9 : vector<2x1xf32> to vector<2x512xf32>
    %12 = vector.broadcast %10 : vector<1x512xf32> to vector<2x512xf32>
    %13 = arith.mulf %11, %12 : vector<2x512xf32>
    %14 = arith.addf %8, %13 : vector<2x512xf32>
    %15 = vector.extract_strided_slice %0 {offsets = [0, 2], sizes = [2, 1], strides = [1, 1]} : vector<2x3xf32> to vector<2x1xf32>
    %c2 = arith.constant 2 : index
    %c0_5 = arith.constant 0 : index
    %16 = vector.load %arg2[%c2, %c0_5] : memref<4x512xf32, #tpu.memory_space<vmem>>, vector<1x512xf32>
    %17 = vector.broadcast %15 : vector<2x1xf32> to vector<2x512xf32>
    %18 = vector.broadcast %16 : vector<1x512xf32> to vector<2x512xf32>
    %19 = arith.mulf %17, %18 : vector<2x512xf32>
    %20 = arith.addf %14, %19 : vector<2x512xf32>
    %21 = vector.extract_strided_slice %20 {offsets = [0, 0], sizes = [2, 256], strides = [1, 1]} : vector<2x512xf32> to vector<2x256xf32>
    %22 = vector.extract_strided_slice %20 {offsets = [0, 256], sizes = [2, 256], strides = [1, 1]} : vector<2x512xf32> to vector<2x256xf32>
    %c0_6 = arith.constant 0 : index
    %c0_7 = arith.constant 0 : index
    %23 = vector.load %arg1[%c0_6, %c0_7] : memref<2x256xf32, #tpu.memory_space<vmem>>, vector<2x256xf32>
    %24 = arith.mulf %21, %23 : vector<2x256xf32>
    %25 = arith.addf %24, %22 : vector<2x256xf32>
    %26 = math.tanh %25 : vector<2x256xf32>
    %c0_8 = arith.constant 0 : index
    %c0_9 = arith.constant 0 : index
    %27 = vector.load %arg3[%c0_8, %c0_9] : memref<2x256xf32, #tpu.memory_space<vmem>>, vector<2x256xf32>
    tpu.vector_store %arg3[%c0_8, %c0_9], %26 {strides = array<i32>} : memref<2x256xf32, #tpu.memory_space<vmem>>, vector<2x256xf32>,
    return
  }
}

</mosaic_0001>

<llo_original>
// kernel: state_encoder.1
$region0: #{state_encoder.1}
  #allocation0 [shape = 'u32[]', space=smem, size = 0x4, offset = 0x4, fixed_abs, tag = 'smem constant byte address 0x4 - core index']
  #allocation1 [shape = 'u32[144,128]{1,0:T(1,128)}', space=vmem, size = 0x12000, scoped, tag = 'internal scratch']
  %s0 = inlined_call_operand.vmem [shape: f32[2,3], index: 0, kind: input, shape index: {}]
  %s1 = inlined_call_operand.hbm [shape: f32[2,256], index: 1, kind: input, shape index: {}]
  %s2 = inlined_call_operand.hbm [shape: f32[4,512], index: 2, kind: input, shape index: {}]
  %s3 = inlined_call_operand.hbm [shape: f32[2,256], index: 3, kind: output, shape index: {}]
  %s4 = sld [smem:[#allocation0]]
  $region30: #{state_encoder.1} parent=0
    _
  %s6 = ssub.s32 1, %s4
  %s7 = scalar_select 0, %s6, %s4
  $region1: #{state_encoder.1} parent=0
    #allocation2 [shape = 'u8[2048]{0}', space=vmem, size = 0x800, scoped, tag = 'input window, operand 1, single buffered']
    #allocation3 [shape = 's32[1]{0}', space=sflag, size = 0x4, scoped, tag = 'scoped memory for state_encoder.1']
    #allocation4 [shape = 's32[1]{0}', space=sflag, size = 0x4, scoped, tag = 'scoped memory for state_encoder.1']
    #allocation5 [shape = 'u8[8192]{0}', space=vmem, size = 0x2000, scoped, tag = 'input window, operand 2, single buffered']
    #allocation6 [shape = 's32[1]{0}', space=sflag, size = 0x4, scoped, tag = 'scoped memory for state_encoder.1']
    #allocation7 [shape = 'u8[2048]{0}', space=vmem, size = 0x800, scoped, tag = 'output window, operand 0, single buffered']
    %8 = vsyncpa [#allocation3], 0
    %9 = vsyncpa [#allocation6], 0
    %10 = vsyncpa [#allocation4], 0
    // Predicated region
    $region2: #{state_encoder.1} parent=1 // pred_check
      _
    $region3: #{state_encoder.1} parent=1 // pred_check_branch
      %12 = sbr.rel (0) target = $region5
    $region4: #{state_encoder.1} parent=1 // pred_region
      _
    $region5: #{state_encoder.1} parent=1 // pred_fallthru
      _
    // Predicated region
    $region6: #{state_encoder.1} parent=1 // pred_check
      _
    $region7: #{state_encoder.1} parent=1 // pred_check_branch
      %14 = sbr.rel (0) target = $region9
    $region8: #{state_encoder.1} parent=1 // pred_region
      %s16 = ssub.s32 64, 64
      %17 = vsyncadd [#allocation3], %s16
      %s19 = sshll.u32 [#allocation2], 4
      %s20 = int_to_ptr.vmem [resolvable:$true] %s19
      %22 = dma.hbm_to_vmem [thread:$0]  %s1, 64, %s20, [#allocation3]
    $region9: #{state_encoder.1} parent=1 // pred_fallthru
      _
    // Predicated region
    $region10: #{state_encoder.1} parent=1 // pred_check
      _
    $region11: #{state_encoder.1} parent=1 // pred_check_branch
      %24 = sbr.rel (0) target = $region13
    $region12: #{state_encoder.1} parent=1 // pred_region
      %s26 = ssub.s32 256, 256
      %27 = vsyncadd [#allocation6], %s26
      %s29 = sshll.u32 [#allocation5], 4
      %s30 = int_to_ptr.vmem [resolvable:$true] %s29
      %32 = dma.hbm_to_vmem [thread:$0]  %s2, 256, %s30, [#allocation6]
    $region13: #{state_encoder.1} parent=1 // pred_fallthru
      _
    // Predicated region
    $region14: #{state_encoder.1} parent=1 // pred_check
      _
    $region15: #{state_encoder.1} parent=1 // pred_check_branch
      %34 = sbr.rel (0) target = $region17
    $region16: #{state_encoder.1} parent=1 // pred_region
      %35 = dma.done [#allocation3], 64
    $region17: #{state_encoder.1} parent=1 // pred_fallthru
      _
    // Predicated region
    $region18: #{state_encoder.1} parent=1 // pred_check
      _
    $region19: #{state_encoder.1} parent=1 // pred_check_branch
      %37 = sbr.rel (0) target = $region21
    $region20: #{state_encoder.1} parent=1 // pred_region
      %38 = dma.done [#allocation6], 256
    $region21: #{state_encoder.1} parent=1 // pred_fallthru
      _
    %v39 = vld [vmem:[%s0] sm:$0x3]
    %s40 = scalar_lea.vmem [#allocation5], 3
    %v41 = vld [vmem:[%s40] ss:$4 sm:$0xf]
    %v42 = vld [vmem:[#allocation5] ss:$4 sm:$0xf]
    %44 = vset.pattern.permute.xlu0 0
    %45 = vperm.xlu0 %44, %v39
    %v46 = vpop.permute.xlu0 %45
    %v49 = vlaneseq
    %v50 = vshrl.u32 %v49, 7
    %v51 = vsub.s32 0, %v50
    %v52 = vrot.slane %v42, %v51
    %v53 = vlaneseq
    %v54 = vshrl.u32 %v53, 7
    %v55 = vsub.s32 1, %v54
    %v56 = vrot.slane %v42, %v55
    %v57 = vlaneseq
    %v58 = vshrl.u32 %v57, 7
    %v59 = vsub.s32 2, %v58
    %v60 = vrot.slane %v42, %v59
    %v61 = vlaneseq
    %v62 = vshrl.u32 %v61, 7
    %v63 = vsub.s32 3, %v62
    %v64 = vrot.slane %v42, %v63
    %v69 = vmul.f32 %v46, %v52
    %v70 = vmul.f32 %v46, %v56
    %v71 = vmul.f32 %v46, %v60
    %v72 = vmul.f32 %v46, %v64
    %v74 = vlaneseq
    %v75 = vshrl.u32 %v74, 7
    %v76 = vsub.s32 0, %v75
    %v77 = vrot.slane %v41, %v76
    %v78 = vlaneseq
    %v79 = vshrl.u32 %v78, 7
    %v80 = vsub.s32 1, %v79
    %v81 = vrot.slane %v41, %v80
    %v82 = vlaneseq
    %v83 = vshrl.u32 %v82, 7
    %v84 = vsub.s32 2, %v83
    %v85 = vrot.slane %v41, %v84
    %v86 = vlaneseq
    %v87 = vshrl.u32 %v86, 7
    %v88 = vsub.s32 3, %v87
    %v89 = vrot.slane %v41, %v88
    %v94 = vadd.f32 %v77, %v69
    %v95 = vadd.f32 %v81, %v70
    %v96 = vadd.f32 %v85, %v71
    %v97 = vadd.f32 %v89, %v72
    %s98 = scalar_lea.vmem [#allocation5], 1
    %v99 = vld [vmem:[%s98] ss:$4 sm:$0xf]
    %100 = vset.pattern.permute.xlu0 1
    %101 = vperm.xlu0 %100, %v39
    %v102 = vpop.permute.xlu0 %101
    %v105 = vlaneseq
    %v106 = vshrl.u32 %v105, 7
    %v107 = vsub.s32 0, %v106
    %v108 = vrot.slane %v99, %v107
    %v109 = vlaneseq
    %v110 = vshrl.u32 %v109, 7
    %v111 = vsub.s32 1, %v110
    %v112 = vrot.slane %v99, %v111
    %v113 = vlaneseq
    %v114 = vshrl.u32 %v113, 7
    %v115 = vsub.s32 2, %v114
    %v116 = vrot.slane %v99, %v115
    %v117 = vlaneseq
    %v118 = vshrl.u32 %v117, 7
    %v119 = vsub.s32 3, %v118
    %v120 = vrot.slane %v99, %v119
    %v125 = vmul.f32 %v102, %v108
    %v126 = vmul.f32 %v102, %v112
    %v127 = vmul.f32 %v102, %v116
    %v128 = vmul.f32 %v102, %v120
    %v129 = vadd.f32 %v94, %v125
    %v130 = vadd.f32 %v95, %v126
    %v131 = vadd.f32 %v96, %v127
    %v132 = vadd.f32 %v97, %v128
    %s133 = scalar_lea.vmem [#allocation5], 2
    %v134 = vld [vmem:[%s133] ss:$4 sm:$0xf]
    %135 = vset.pattern.permute.xlu0 2
    %136 = vperm.xlu0 %135, %v39
    %v137 = vpop.permute.xlu0 %136
    %v140 = vlaneseq
    %v141 = vshrl.u32 %v140, 7
    %v142 = vsub.s32 0, %v141
    %v143 = vrot.slane %v134, %v142
    %v144 = vlaneseq
    %v145 = vshrl.u32 %v144, 7
    %v146 = vsub.s32 1, %v145
    %v147 = vrot.slane %v134, %v146
    %v148 = vlaneseq
    %v149 = vshrl.u32 %v148, 7
    %v150 = vsub.s32 2, %v149
    %v151 = vrot.slane %v134, %v150
    %v152 = vlaneseq
    %v153 = vshrl.u32 %v152, 7
    %v154 = vsub.s32 3, %v153
    %v155 = vrot.slane %v134, %v154
    %v160 = vmul.f32 %v137, %v143
    %v161 = vmul.f32 %v137, %v147
    %v162 = vmul.f32 %v137, %v151
    %v163 = vmul.f32 %v137, %v155
    %v164 = vadd.f32 %v129, %v160
    %v165 = vadd.f32 %v130, %v161
    %v166 = vadd.f32 %v131, %v162
    %v167 = vadd.f32 %v132, %v163
    %v168 = vld [vmem:[#allocation2] sm:$0xf]
    %v171 = vunpack.c.l.s4 1983009808
    %v172 = vunpack.c.0.s8 %v171
    %v173 = vlaneseq
    %v174 = vshrl.u32 %v173, 7
    %v175 = vsub.s32 %v172, %v174
    %v176 = vrot.slane %v168, %v175
    %v177 = vcombine.high %v176, %v176
    %v180 = vmul.f32 %v164, %v176
    %v181 = vmul.f32 %v165, %v177
    %v182 = vadd.f32 %v180, %v166
    %v183 = vadd.f32 %v181, %v167
    %v184 = vtanh.pop %v182
    %v185 = vtanh.pop %v183
    %v188 = vcombine.low %v184, %v185
    %v190 = vunpack.c.l.s4 1983009808
    %v191 = vunpack.c.0.s8 %v190
    %v192 = vlaneseq
    %v193 = vshrl.u32 %v192, 7
    %v194 = vsub.s32 %v191, %v193
    %v195 = vrot.slane %v188, %v194
    %197 = vst [vmem:[#allocation7] sm:$0xf] %v195
    // Predicated region
    $region22: #{state_encoder.1} parent=1 // pred_check
      _
    $region23: #{state_encoder.1} parent=1 // pred_check_branch
      %199 = sbr.rel (0) target = $region25
    $region24: #{state_encoder.1} parent=1 // pred_region
      %s201 = ssub.s32 64, 64
      %202 = vsyncadd [#allocation4], %s201
      %s204 = sshll.u32 [#allocation7], 4
      %s205 = int_to_ptr.vmem [resolvable:$true] %s204
      %207 = dma.vmem_to_hbm [thread:$0]  %s205, 64, %s3, [#allocation4]
    $region25: #{state_encoder.1} parent=1 // pred_fallthru
      _
    // Predicated region
    $region26: #{state_encoder.1} parent=1 // pred_check
      _
    $region27: #{state_encoder.1} parent=1 // pred_check_branch
      %209 = sbr.rel (0) target = $region29
    $region28: #{state_encoder.1} parent=1 // pred_region
      %210 = dma.done [#allocation4], 64
    $region29: #{state_encoder.1} parent=1 // pred_fallthru
      _
    %211 = vsyncpa [#allocation3], 1
    %212 = vsyncpa [#allocation6], 1
    %213 = vsyncpa [#allocation4], 1

</llo_original>
